<compile_context>
chip_gen: v6e
topology: v6e:2x2x1
jax: 0.10.0
libtpu: 0.0.40
codegen_flags: <defaults>
</compile_context>

<pallas_src>
import jax
import jax.numpy as jnp
from jax.experimental import pallas as pl
from jax.experimental.pallas import tpu as pltpu


def _bilinear_matrix(n_in: int, n_out: int) -> jnp.ndarray:
    """Interpolation matrix A (n_out, n_in) s.t. y_out = A @ y_in matches
    torch.nn.Upsample(mode='bilinear', align_corners=True) along one axis."""
    if n_out == 1 or n_in == 1:
        src = jnp.zeros((n_out,), jnp.float32)
    else:
        src = jnp.arange(n_out, dtype=jnp.float32) * (n_in - 1) / (n_out - 1)
    lo = jnp.clip(jnp.floor(src).astype(jnp.int32), 0, n_in - 1)
    hi = jnp.minimum(lo + 1, n_in - 1)
    frac = src - lo.astype(jnp.float32)
    rows = jnp.arange(n_out)
    A = jnp.zeros((n_out, n_in), jnp.float32)
    A = A.at[rows, lo].add(1.0 - frac)
    A = A.at[rows, hi].add(frac)
    return A


def _choose_nb(N, C, H, W, Hout, Wout, budget_bytes=16 << 20):
    """Images per grid step:
       - amortize per-step overhead,
       - respect the (double-buffered) VMEM budget,
       - keep >= 2 grid steps when N >= 2 (v7x megacore),
       - prefer a divisor of N so the wrapper never has to pad/copy x in HBM."""
    per_img = 4 * (C * H * W + Hout * Wout)           # f32 in + out bytes per image
    by_vmem = max(1, budget_bytes // (2 * per_img))   # 2x for double buffering
    cap = max(1, min(N, 16, by_vmem))
    if N >= 2:
        cap = max(1, min(cap, N // 2))                # guarantee >= 2 grid steps
    # Largest divisor of N within the cap avoids the batch-padding HBM copy.
    for nb in range(cap, 0, -1):
        if N % nb == 0:
            if 2 * nb >= cap:                         # close enough to the cap: take it
                return nb
            break
    return cap                                        # fall back (wrapper pads)


def _fusion_kernel(x_ref, ahw_ref, awt_ref, b_ref, o_ref):
    # x_ref:   (Nb, C*H, W)   batch block, channels*rows merged on the sublane dim
    # ahw_ref: (Hout, C*H)    conv weights folded into the H-interp matrix
    # awt_ref: (W, Wout)      transposed W-interp matrix
    # b_ref:   (1,)           conv bias (SMEM scalar)
    # o_ref:   (Nb, Hout, Wout)
    ahw = ahw_ref[...]
    awt = awt_ref[...]
    bias = b_ref[0]
    nb = x_ref.shape[0]
    hout = ahw.shape[0]

    # Stage 1: per image, channel-fold + H-interp in one matmul (static unroll, nb small).
    y2 = jnp.concatenate(
        [jnp.dot(ahw, x_ref[n], preferred_element_type=jnp.float32) for n in range(nb)],
        axis=0)                                                    # (Nb*Hout, W)

    # Stage 2: W-interp for all Nb images in a single tall matmul (M = Nb*Hout).
    out = jnp.dot(y2, awt, preferred_element_type=jnp.float32) + bias  # (Nb*Hout, Wout)

    # Splitting the leading (sublane) dim back into (Nb, Hout) is layout-free.
    o_ref[...] = out.reshape(nb, hout, out.shape[-1]).astype(o_ref.dtype)


def fusion_net_forward(x, conv_w, conv_b, output_size, *, batch_block=None):
    """x: (N, C, H, W); conv_w: (1, C, 1, 1); conv_b: (1,).
    Returns (N, 1, Hout, Wout) f32 matching FusionNet.forward."""
    N, C, H, W = x.shape
    Hout, Wout = output_size

    # Interpolation matrices (tiny, built once outside the kernel).
    A_h = _bilinear_matrix(H, Hout)                    # (Hout, H)
    A_wT = _bilinear_matrix(W, Wout).T                 # (W, Wout)

    # Fold the 1x1 conv weights into the H-interp matrix:
    #   A_hw @ x.reshape(C*H, W) == A_h @ (sum_c w[c] * x[c])
    w = conv_w.reshape(C).astype(jnp.float32)
    A_hw = jnp.transpose(w[:, None, None] * A_h[None, :, :], (1, 0, 2)).reshape(Hout, C * H)

    bias = conv_b.reshape(1).astype(jnp.float32)       # SMEM scalar

    nb = batch_block or _choose_nb(N, C, H, W, Hout, Wout)
    G = pl.cdiv(N, nb)
    Npad = G * nb

    # Leading-dim merge (free, W stays the lane axis). Keep x's native dtype:
    # any cast happens inside the kernel after the DMA, not in the wrapper.
    x3 = x.reshape(N, C * H, W)
    if Npad != N:                                      # rare: nb does not divide N
        x3 = jnp.concatenate(
            [x3, jnp.zeros((Npad - N, C * H, W), x3.dtype)], axis=0)

    mat_bytes = 4 * (Hout * C * H + W * Wout)
    blk_bytes = x3.dtype.itemsize * nb * C * H * W + 4 * nb * Hout * Wout
    vmem_limit = int(min(max(2 * blk_bytes + 2 * mat_bytes + (4 << 20), 16 << 20),
                         48 << 20))
    # TODO(synk): for very large Hout*Wout (per-step blocks approaching ~16 MiB) add an
    # Hout-tiling grid axis so double-buffered blocks stay inside v7x's 64 MiB VMEM.

    flops = 2 * Npad * (Hout * C * H * W + Hout * W * Wout)
    bytes_accessed = int(x3.size * x3.dtype.itemsize
                         + Npad * Hout * Wout * 4 + mat_bytes + 4)
    cost = pl.CostEstimate(flops=flops, transcendentals=0,
                           bytes_accessed=bytes_accessed)

    out = pl.pallas_call(
        _fusion_kernel,
        out_shape=jax.ShapeDtypeStruct((Npad, Hout, Wout), jnp.float32),
        grid_spec=pltpu.PrefetchScalarGridSpec(
            num_scalar_prefetch=0,
            grid=(G,),
            in_specs=[
                pl.BlockSpec((nb, C * H, W), lambda g: (g, 0, 0)),
                pl.BlockSpec((Hout, C * H), lambda g: (0, 0)),
                pl.BlockSpec((W, Wout), lambda g: (0, 0)),
                pl.BlockSpec(memory_space=pltpu.MemorySpace.SMEM),
            ],
            out_specs=pl.BlockSpec((nb, Hout, Wout), lambda g: (g, 0, 0)),
        ),
        compiler_params=pltpu.CompilerParams(
            dimension_semantics=("parallel",),
            vmem_limit_bytes=vmem_limit),
        cost_estimate=cost,
    )(x3, A_hw, A_wT, bias)

    return out[:N].reshape(N, 1, Hout, Wout)


def _reference(x, conv_w, conv_b, output_size):
    """Pure-JAX reference of FusionNet.forward (conv1x1 + bilinear align_corners)."""
    N, C, H, W = x.shape
    Hout, Wout = output_size
    A_h = _bilinear_matrix(H, Hout)
    A_w = _bilinear_matrix(W, Wout)
    y = jnp.einsum('nchw,c->nhw', x.astype(jnp.float32),
                   conv_w.reshape(C).astype(jnp.float32)) + conv_b.reshape(())
    out = jnp.einsum('oh,nhw,pw->nop', A_h, y, A_w)
    return out.reshape(N, 1, Hout, Wout)


if __name__ == "__main__":
    # Small shapes consistent with the module: N=2, C=4, H=W=16, output_size=(32, 32)
    N, C, H, W = 2, 4, 16, 16
    output_size = (32, 32)

    key = jax.random.PRNGKey(0)
    kx, kw, kb = jax.random.split(key, 3)
    x = jax.random.normal(kx, (N, C, H, W), dtype=jnp.float32)
    conv_w = jax.random.normal(kw, (1, C, 1, 1), dtype=jnp.float32) * 0.1
    conv_b = jax.random.normal(kb, (1,), dtype=jnp.float32) * 0.1

    out = fusion_net_forward(x, conv_w, conv_b, output_size)
    out = jax.block_until_ready(out)
    assert out.shape == (N, 1, output_size[0], output_size[1])

    ref = jax.block_until_ready(_reference(x, conv_w, conv_b, output_size))
    assert jnp.allclose(out, ref, atol=1e-4, rtol=1e-4), float(jnp.max(jnp.abs(out - ref)))

    print("KERNEL_OK")
</pallas_src>

<mosaic_0001>
module attributes {stable_mosaic.version = 11 : i64} {
  func.func @_fusion_kernel(%arg0: i32, %arg1: memref<1x64x16xf32, #tpu.memory_space<vmem>>, %arg2: memref<32x64xf32, #tpu.memory_space<vmem>>, %arg3: memref<16x32xf32, #tpu.memory_space<vmem>>, %arg4: memref<1xf32, #tpu.memory_space<smem>>, %arg5: memref<1x32x32xf32, #tpu.memory_space<vmem>>) attributes {dimension_semantics = [#tpu.dimension_semantics<parallel>], iteration_bounds = array<i64: 2>, scalar_prefetch = 0 : i64, scratch_operands = 0 : i64, tpu.core_type = #tpu.core_type<tc>, window_params = [{transform_indices = @transform_0, window_bounds = array<i64: 1, 64, 16>}, {pipeline_mode = #tpu.pipeline_mode<synchronous>, transform_indices = @transform_1, window_bounds = array<i64: 32, 64>}, {pipeline_mode = #tpu.pipeline_mode<synchronous>, transform_indices = @transform_2, window_bounds = array<i64: 16, 32>}, {transform_indices = @transform_3, window_bounds = array<i64: 1>}, {transform_indices = @transform_4, window_bounds = array<i64: 1, 32, 32>}]} {
    %c0 = arith.constant 0 : index
    %c0_0 = arith.constant 0 : index
    %0 = vector.load %arg2[%c0, %c0_0] : memref<32x64xf32, #tpu.memory_space<vmem>>, vector<32x64xf32>
    %c0_1 = arith.constant 0 : index
    %c0_2 = arith.constant 0 : index
    %1 = vector.load %arg3[%c0_1, %c0_2] : memref<16x32xf32, #tpu.memory_space<vmem>>, vector<16x32xf32>
    %c0_3 = arith.constant 0 : index
    %2 = memref.load %arg4[%c0_3] : memref<1xf32, #tpu.memory_space<smem>>
    %c0_4 = arith.constant 0 : index
    %c0_5 = arith.constant 0 : index
    %c0_6 = arith.constant 0 : index
    %3 = vector.load %arg1[%c0_4, %c0_5, %c0_6] : memref<1x64x16xf32, #tpu.memory_space<vmem>>, vector<1x64x16xf32>
    %4 = vector.shape_cast %3 : vector<1x64x16xf32> to vector<64x16xf32>
    %cst = arith.constant dense<0.000000e+00> : vector<32x16xf32>
    %5 = tpu.matmul %0, %4, %cst {dimension_numbers = #tpu.dot_dimension_numbers<[1], [0], [0], [1], [0, 0, 1, 1], [], []>} : vector<32x64xf32>, vector<64x16xf32>, vector<32x16xf32> -> vector<32x16xf32>
    %cst_7 = arith.constant dense<0.000000e+00> : vector<32x32xf32>
    %6 = tpu.matmul %5, %1, %cst_7 {dimension_numbers = #tpu.dot_dimension_numbers<[1], [0], [0], [1], [0, 0, 1, 1], [], []>} : vector<32x16xf32>, vector<16x32xf32>, vector<32x32xf32> -> vector<32x32xf32>
    %7 = vector.broadcast %2 : f32 to vector<32x32xf32>
    %8 = arith.addf %6, %7 : vector<32x32xf32>
    %9 = vector.shape_cast %8 : vector<32x32xf32> to vector<1x32x32xf32>
    %c0_8 = arith.constant 0 : index
    %c0_9 = arith.constant 0 : index
    %c0_10 = arith.constant 0 : index
    %10 = vector.load %arg5[%c0_8, %c0_9, %c0_10] : memref<1x32x32xf32, #tpu.memory_space<vmem>>, vector<1x32x32xf32>
    tpu.vector_store %arg5[%c0_8, %c0_9, %c0_10], %9 {strides = array<i32>} : memref<1x32x32xf32, #tpu.memory_space<vmem>>, vector<1x32x32xf32>,
    return
  }
  func.func @transform_0(%arg0: i32) -> (i32, i32, i32) {
    %c0_i32 = arith.constant 0 : i32
    %c0_i32_0 = arith.constant 0 : i32
    %c0_i32_1 = arith.constant 0 : i32
    return %arg0, %c0_i32, %c0_i32_0 : i32, i32, i32
  }
  func.func @transform_1(%arg0: i32) -> (i32, i32) {
    %c0_i32 = arith.constant 0 : i32
    %c0_i32_0 = arith.constant 0 : i32
    %c0_i32_1 = arith.constant 0 : i32
    return %c0_i32, %c0_i32_0 : i32, i32
  }
  func.func @transform_2(%arg0: i32) -> (i32, i32) {
    %c0_i32 = arith.constant 0 : i32
    %c0_i32_0 = arith.constant 0 : i32
    %c0_i32_1 = arith.constant 0 : i32
    return %c0_i32, %c0_i32_0 : i32, i32
  }
  func.func @transform_3(%arg0: i32) -> i32 {
    %c0_i32 = arith.constant 0 : i32
    %c0_i32_0 = arith.constant 0 : i32
    return %c0_i32 : i32
  }
  func.func @transform_4(%arg0: i32) -> (i32, i32, i32) {
    %c0_i32 = arith.constant 0 : i32
    %c0_i32_0 = arith.constant 0 : i32
    %c0_i32_1 = arith.constant 0 : i32
    return %arg0, %c0_i32, %c0_i32_0 : i32, i32, i32
  }
}

</mosaic_0001>

<llo_original>
// kernel: tpu_custom_call.1
$region0: #{tpu_custom_call.1}
  #allocation0 [shape = 'u32[]', space=smem, size = 0x4, offset = 0x4, fixed_abs, tag = 'smem constant byte address 0x4 - core index']
  #allocation1 [shape = 'u32[144,128]{1,0:T(1,128)}', space=vmem, size = 0x12000, scoped, tag = 'internal scratch']
  #allocation2 [shape = 'f32[1]{0:T(128)S(6)}', space=smem, size = 0x200, scoped, tag = 'scoped memory for tpu_custom_call.1']
  %s0 = inlined_call_operand.vmem [shape: f32[2,64,16], index: 0, kind: input, shape index: {}]
  %s1 = inlined_call_operand.vmem [shape: f32[32,64], index: 1, kind: input, shape index: {}]
  %s2 = inlined_call_operand.vmem [shape: f32[16,32], index: 2, kind: input, shape index: {}]
  %s3 = inlined_call_operand.<no memory space> [shape: f32[1], index: 3, kind: input, shape index: {}]
  %s4 = inlined_call_operand.hbm [shape: f32[2,32,32], index: 4, kind: output, shape index: {}]
  %s5 = sld [smem:[#allocation0]]
  $region49: #{tpu_custom_call.1} parent=0
    _
  %s7 = ssub.s32 1, %s5
  %s8 = scalar_select 0, %s7, %s5
  %9 = sst [smem:[#allocation2]] %s3
  $region1: #{tpu_custom_call.1} parent=0
    #allocation3 [shape = 'u8[32768]{0}', space=vmem, size = 0x8000, scoped, tag = 'output window, operand 0']
    #allocation4 [shape = 's32[2]{0}', space=sflag, size = 0x8, scoped, tag = 'scoped memory for tpu_custom_call.1']
    %10 = vsyncpa [#allocation4], 0
    %s11 = scalar_lea.sflag [#allocation4], 1
    %12 = vsyncpa %s11, 0
    loop: start=0, step=1, limit=4
    $region2: #{tpu_custom_call.1} parent=1 // loop_pre_header
      _
    $region3: #{tpu_custom_call.1} parent=1 // loop_header
      %s14 = sphi 0, %s18
      %p15 = scmp.ge.s32.totalorder %s14, 4
      %s24 = sphi 0, %s26
      %s27 = sphi 0, %s24
      %s28 = sphi 0, %s27
      %s44 = sphi 0, %s28
      %s48 = sphi 0, %s48
      %s50 = sphi 0, %s48
      %s51 = sphi 0, %s50
      %s65 = sphi 0, %s51
      %s69 = sphi 0, %s69
      %s71 = sphi 0, %s69
      %s72 = sphi 0, %s71
      %s86 = sphi 0, %s72
      %s90 = sphi 0, %s90
      %s92 = sphi 0, %s90
      %s93 = sphi 0, %s92
      %s107 = sphi 0, %s93
      %s113 = sphi 0, %s115
      %s116 = sphi 0, %s113
      %s117 = sphi 0, %s116
      %s133 = sphi 0, %s117
    $region4: #{tpu_custom_call.1} parent=1 // loop_header_branch
      %17 = sbr.rel (%p15) target = $region8
    $region5: #{tpu_custom_call.1} parent=1 // loop_body
      %s19 = ssub.s32 %s14, 1
      %s20 = ssub.s32 %s14, 2
      %s21 = sadd.s32 %s14, 1
      %s22 = ssub.s32 %s14, %s21
      %p23 = scmp.eq.s32.totalorder %s22, 0
      %s25 = sadd.s32 %s24, 1
      %s26 = scalar_select %p23, %s24, %s25
      %p29 = pneg %p23
      %p30 = scmp.eq.s32.totalorder %s14, 1
      %p31 = por %p29, %p30
      %p32 = scmp.ne.s32.totalorder %s24, %s27
      %p33 = scmp.eq.s32.totalorder %s14, 0
      %p34 = por %p32, %p33
      %p35 = scmp.ne.s32.totalorder %s24, %s27
      %p36 = scmp.eq.s32.totalorder %s19, 1
      %p37 = por %p35, %p36
      %p38 = scmp.ne.s32.totalorder %s27, %s28
      %p39 = scmp.eq.s32.totalorder %s19, 0
      %p40 = por %p38, %p39
      %p41 = scmp.ne.s32.totalorder %s27, %s28
      %p42 = scmp.eq.s32.totalorder %s20, 1
      %p43 = por %p41, %p42
      %p45 = scmp.ne.s32.totalorder %s28, %s44
      %p46 = scmp.eq.s32.totalorder %s20, 0
      %p47 = por %p45, %p46
      %s49 = sadd.s32 %s48, 1
      %p52 = scmp.eq.s32.totalorder %s14, 1
      %p53 = scmp.ne.s32.totalorder %s48, %s50
      %p54 = scmp.eq.s32.totalorder %s14, 0
      %p55 = por %p53, %p54
      %p56 = scmp.ne.s32.totalorder %s48, %s50
      %p57 = scmp.eq.s32.totalorder %s19, 1
      %p58 = por %p56, %p57
      %p59 = scmp.ne.s32.totalorder %s50, %s51
      %p60 = scmp.eq.s32.totalorder %s19, 0
      %p61 = por %p59, %p60
      %p62 = scmp.ne.s32.totalorder %s50, %s51
      %p63 = scmp.eq.s32.totalorder %s20, 1
      %p64 = por %p62, %p63
      %p66 = scmp.ne.s32.totalorder %s51, %s65
      %p67 = scmp.eq.s32.totalorder %s20, 0
      %p68 = por %p66, %p67
      %s70 = sadd.s32 %s69, 1
      %p73 = scmp.eq.s32.totalorder %s14, 1
      %p74 = scmp.ne.s32.totalorder %s69, %s71
      %p75 = scmp.eq.s32.totalorder %s14, 0
      %p76 = por %p74, %p75
      %p77 = scmp.ne.s32.totalorder %s69, %s71
      %p78 = scmp.eq.s32.totalorder %s19, 1
      %p79 = por %p77, %p78
      %p80 = scmp.ne.s32.totalorder %s71, %s72
      %p81 = scmp.eq.s32.totalorder %s19, 0
      %p82 = por %p80, %p81
      %p83 = scmp.ne.s32.totalorder %s71, %s72
      %p84 = scmp.eq.s32.totalorder %s20, 1
      %p85 = por %p83, %p84
      %p87 = scmp.ne.s32.totalorder %s72, %s86
      %p88 = scmp.eq.s32.totalorder %s20, 0
      %p89 = por %p87, %p88
      %s91 = sadd.s32 %s90, 1
      %p94 = scmp.eq.s32.totalorder %s14, 1
      %p95 = scmp.ne.s32.totalorder %s90, %s92
      %p96 = scmp.eq.s32.totalorder %s14, 0
      %p97 = por %p95, %p96
      %p98 = scmp.ne.s32.totalorder %s90, %s92
      %p99 = scmp.eq.s32.totalorder %s19, 1
      %p100 = por %p98, %p99
      %p101 = scmp.ne.s32.totalorder %s92, %s93
      %p102 = scmp.eq.s32.totalorder %s19, 0
      %p103 = por %p101, %p102
      %p104 = scmp.ne.s32.totalorder %s92, %s93
      %p105 = scmp.eq.s32.totalorder %s20, 1
      %p106 = por %p104, %p105
      %p108 = scmp.ne.s32.totalorder %s93, %s107
      %p109 = scmp.eq.s32.totalorder %s20, 0
      %p110 = por %p108, %p109
      %s111 = ssub.s32 %s14, %s21
      %p112 = scmp.eq.s32.totalorder %s111, 0
      %s114 = sadd.s32 %s113, 1
      %s115 = scalar_select %p112, %s113, %s114
      %p118 = pneg %p112
      %p119 = scmp.eq.s32.totalorder %s14, 1
      %p120 = por %p118, %p119
      %p121 = scmp.ne.s32.totalorder %s113, %s116
      %p122 = scmp.eq.s32.totalorder %s14, 0
      %p123 = por %p121, %p122
      %p124 = scmp.ne.s32.totalorder %s113, %s116
      %p125 = scmp.eq.s32.totalorder %s19, 1
      %p126 = por %p124, %p125
      %p127 = scmp.ne.s32.totalorder %s116, %s117
      %p128 = scmp.eq.s32.totalorder %s19, 0
      %p129 = por %p127, %p128
      %p130 = scmp.ne.s32.totalorder %s116, %s117
      %p131 = scmp.eq.s32.totalorder %s20, 1
      %p132 = por %p130, %p131
      %p134 = scmp.ne.s32.totalorder %s117, %s133
      %p135 = scmp.eq.s32.totalorder %s20, 0
      %p136 = por %p134, %p135
      %p137 = scmp.le.s32.totalorder 1, %s14
      %p138 = scmp.lt.s32.totalorder %s14, 3
      %p139 = pnand %p137, %p138
      %p140 = pneg %p139
      // Predicated region
      $region9: #{tpu_custom_call.1} parent=5 // pred_check
        _
      $region10: #{tpu_custom_call.1} parent=5 // pred_check_branch
        %142 = sbr.rel (%p139) target = $region12
      $region11: #{tpu_custom_call.1} parent=5 // pred_region
        %s143 = ssub.s32 %s14, 1
        // Predicated region
        $region13: #{tpu_custom_call.1} parent=11 // pred_check
          %p144 = pneg %p61
        $region14: #{tpu_custom_call.1} parent=11 // pred_check_branch
          %146 = sbr.rel (%p144) target = $region16
        $region15: #{tpu_custom_call.1} parent=11 // pred_region
          _
        $region16: #{tpu_custom_call.1} parent=11 // pred_fallthru
          _
        // Predicated region
        $region17: #{tpu_custom_call.1} parent=11 // pred_check
          %p147 = pneg %p82
        $region18: #{tpu_custom_call.1} parent=11 // pred_check_branch
          %149 = sbr.rel (%p147) target = $region20
        $region19: #{tpu_custom_call.1} parent=11 // pred_region
          _
        $region20: #{tpu_custom_call.1} parent=11 // pred_fallthru
          _
        // Predicated region
        $region21: #{tpu_custom_call.1} parent=11 // pred_check
          %p150 = pneg %p103
        $region22: #{tpu_custom_call.1} parent=11 // pred_check_branch
          %152 = sbr.rel (%p150) target = $region24
        $region23: #{tpu_custom_call.1} parent=11 // pred_region
          _
        $region24: #{tpu_custom_call.1} parent=11 // pred_fallthru
          _
      $region12: #{tpu_custom_call.1} parent=5 // pred_fallthru
        _
      %p153 = scmp.lt.s32.totalorder %s14, 2
      // Predicated region
      $region25: #{tpu_custom_call.1} parent=5 // pred_check
        %p154 = pneg %p153
      $region26: #{tpu_custom_call.1} parent=5 // pred_check_branch
        %156 = sbr.rel (%p154) target = $region28
      $region27: #{tpu_custom_call.1} parent=5 // pred_region
        // Predicated region
        $region29: #{tpu_custom_call.1} parent=27 // pred_check
          %p157 = pneg %p34
        $region30: #{tpu_custom_call.1} parent=27 // pred_check_branch
          %159 = sbr.rel (%p157) target = $region32
        $region31: #{tpu_custom_call.1} parent=27 // pred_region
          %p160 = scmp.lt.s32.totalorder %s14, 1
          %s161 = scalar_select %p160, %s14, 1
          %s162 = smul.addr %s161, 8
          %s163 = smul.addr %s162, 8
          %s164 = scalar_lea.vmem %s0, %s163
        $region32: #{tpu_custom_call.1} parent=27 // pred_fallthru
          _
      $region28: #{tpu_custom_call.1} parent=5 // pred_fallthru
        _
      %p165 = scmp.le.s32.totalorder 1, %s14
      %p166 = scmp.lt.s32.totalorder %s14, 3
      %p167 = pnand %p165, %p166
      %p168 = pneg %p167
      // Predicated region
      $region33: #{tpu_custom_call.1} parent=5 // pred_check
        _
      $region34: #{tpu_custom_call.1} parent=5 // pred_check_branch
        %170 = sbr.rel (%p167) target = $region36
      $region35: #{tpu_custom_call.1} parent=5 // pred_region
        %s171 = ssub.s32 %s14, 1
        %p172 = scmp.lt.s32.totalorder %s19, 1
        %s173 = scalar_select %p172, %s19, 1
        %s174 = smul.addr %s173, 8
        %s175 = smul.addr %s174, 8
        %s176 = scalar_lea.vmem %s0, %s175
        %p177 = pneg %p40
        %p178 = pneg %p37
        %p179 = pneg %p61
        %p180 = pneg %p58
        %p181 = pneg %p82
        %p182 = pneg %p79
        %p183 = pneg %p103
        %p184 = pneg %p100
        %p185 = pneg %p129
        %p186 = pneg %p126
        %s187 = sand.u32 %s116, 1
        %s188 = scalar_lea.sflag [#allocation4], %s187
        %s189 = sand.u32 %s116, 1
        %s190 = smul.addr %s189, 32
        %s191 = scalar_lea.vmem [#allocation3], %s190
        %p192 = scmp.lt.s32.totalorder %s19, 1
        %s193 = scalar_select %p192, %s19, 1
        %s194 = smul.addr %s193, 8
        %s195 = smul.addr %s194, 8
        %s196 = scalar_lea.vmem %s0, %s195
        %v197 = vld [vmem:[%s1] sm:$0xff]
        %v198 = vld [vmem:[%s1 + $0x8] sm:$0xff]
        %v199 = vld [vmem:[%s1 + $0x10] sm:$0xff]
        %v200 = vld [vmem:[%s1 + $0x18] sm:$0xff]
        %v201 = vld [vmem:[%s2] sm:$0xff]
        %v202 = vld [vmem:[%s2 + $0x8] sm:$0xff]
        %s203 = sld [smem:[#allocation2]]
        %v204 = vld [vmem:[%s196] sm:$0xff]
        %v205 = vld [vmem:[%s196 + $0x8] sm:$0xff]
        %v206 = vld [vmem:[%s196 + $0x10] sm:$0xff]
        %v207 = vld [vmem:[%s196 + $0x18] sm:$0xff]
        %v208 = vld [vmem:[%s196 + $0x20] sm:$0xff]
        %v209 = vld [vmem:[%s196 + $0x28] sm:$0xff]
        %v210 = vld [vmem:[%s196 + $0x30] sm:$0xff]
        %v211 = vld [vmem:[%s196 + $0x38] sm:$0xff]
        %vm212 = vcmask 523264
        %v214 = vsel %vm212, %v197, 0
        %v217 = vsel %vm212, %v198, 0
        %v220 = vsel %vm212, %v199, 0
        %v223 = vsel %vm212, %v200, 0
        %225 = vmatprep.subr.mxu0 0.0
        %226 = vmatpush1.msra.mxu0 0.0
        %227 = vmatprep.subr.mxu0 0.0
        %228 = vmatpush1.msra.mxu0 0.0
        %229 = vmatprep.subr.mxu0 0.0
        %230 = vmatpush1.msra.mxu0 0.0
        %231 = vmatprep.subr.mxu0 0.0
        %232 = vmatpush1.msra.mxu0 0.0
        %233 = vmatprep.subr.mxu0 0.0
        %234 = vmatpush1.msra.mxu0 0.0
        %235 = vmatprep.subr.mxu0 0.0
        %236 = vmatpush1.msra.mxu0 0.0
        %237 = vmatprep.subr.mxu0 0.0
        %238 = vmatpush1.msra.mxu0 0.0
        %239 = vmatprep.subr.mxu0 0.0
        %240 = vmatpush1.msra.mxu0 0.0
        %241 = vmatprep.subr.mxu0 0.0
        %242 = vmatpush1.msra.mxu0 %v211
        %243 = vmatprep.subr.mxu0 0.0
        %244 = vmatpush1.msra.mxu0 %v210
        %245 = vmatprep.subr.mxu0 0.0
        %246 = vmatpush1.msra.mxu0 %v209
        %247 = vmatprep.subr.mxu0 0.0
        %248 = vmatpush1.msra.mxu0 %v208
        %249 = vmatprep.subr.mxu0 0.0
        %250 = vmatpush1.msra.mxu0 %v207
        %251 = vmatprep.subr.mxu0 0.0
        %252 = vmatpush1.msra.mxu0 %v206
        %253 = vmatprep.subr.mxu0 0.0
        %254 = vmatpush1.msra.mxu0 %v205
        %255 = vmatprep.subr.mxu0 0.0
        %256 = vmatpush1.msra.mxu0 %v204
        %257 = vmatprep.subr.mxu0 0.0
        %258 = vmatpush2.msra.mxu0 0.0
        %259 = vmatprep.subr.mxu0 0.0
        %260 = vmatpush2.msra.mxu0 0.0
        %261 = vmatprep.subr.mxu0 0.0
        %262 = vmatpush2.msra.mxu0 0.0
        %263 = vmatprep.subr.mxu0 0.0
        %264 = vmatpush2.msra.mxu0 0.0
        %265 = vmatprep.subr.mxu0 0.0
        %266 = vmatpush2.msra.mxu0 0.0
        %267 = vmatprep.subr.mxu0 0.0
        %268 = vmatpush2.msra.mxu0 0.0
        %269 = vmatprep.subr.mxu0 0.0
        %270 = vmatpush2.msra.mxu0 0.0
        %271 = vmatprep.subr.mxu0 0.0
        %272 = vmatpush2.msra.mxu0 0.0
        %273 = vmatprep.subr.mxu0 0.0
        %274 = vmatpush2.msra.mxu0 0.0
        %275 = vmatprep.subr.mxu0 0.0
        %276 = vmatpush2.msra.mxu0 0.0
        %277 = vmatprep.subr.mxu0 0.0
        %278 = vmatpush2.msra.mxu0 0.0
        %279 = vmatprep.subr.mxu0 0.0
        %280 = vmatpush2.msra.mxu0 0.0
        %281 = vmatprep.subr.mxu0 0.0
        %282 = vmatpush2.msra.mxu0 0.0
        %283 = vmatprep.subr.mxu0 0.0
        %284 = vmatpush2.msra.mxu0 0.0
        %285 = vmatprep.subr.mxu0 0.0
        %286 = vmatpush2.msra.mxu0 0.0
        %287 = vmatprep.subr.mxu0 0.0
        %288 = vmatpush2.msra.mxu0 0.0
        %289 = vmatprep.mubr.f32.mxu0 0.0
        %290 = vmatmul.mubr.f32.gmra.mxu0 %v214
        %v291 = vpop.f32.mrf.mxu0
        %v292 = vadd.f32 0.0, %v291
        %v293 = vpop.f32.mrf.mxu0
        %294 = vmatprep.mubr.f32.mxu0 0.0
        %295 = vmatmul.mubr.f32.gmra.mxu0 %v217
        %v296 = vpop.f32.mrf.mxu0
        %v297 = vadd.f32 0.0, %v296
        %v298 = vpop.f32.mrf.mxu0
        %299 = vmatprep.mubr.f32.mxu0 0.0
        %300 = vmatmul.mubr.f32.gmra.mxu0 %v220
        %v301 = vpop.f32.mrf.mxu0
        %v302 = vadd.f32 0.0, %v301
        %v303 = vpop.f32.mrf.mxu0
        %304 = vmatprep.mubr.f32.mxu0 0.0
        %305 = vmatmul.mubr.f32.gmra.mxu0 %v223
        %v306 = vpop.f32.mrf.mxu0
        %v307 = vadd.f32 0.0, %v306
        %v308 = vpop.f32.mrf.mxu0
        %309 = vdwg.mxu0
        %v310 = vstv %s203
        %vm311 = vcmask 130048
        %v313 = vsel %vm311, %v292, 0
        %v316 = vsel %vm311, %v297, 0
        %v319 = vsel %vm311, %v302, 0
        %v322 = vsel %vm311, %v307, 0
        %324 = vmatprep.subr.mxu0 0.0
        %325 = vmatpush1.msra.mxu0 0.0
        %326 = vmatprep.subr.mxu0 0.0
        %327 = vmatpush1.msra.mxu0 0.0
        %328 = vmatprep.subr.mxu0 0.0
        %329 = vmatpush1.msra.mxu0 0.0
        %330 = vmatprep.subr.mxu0 0.0
        %331 = vmatpush1.msra.mxu0 0.0
        %332 = vmatprep.subr.mxu0 0.0
        %333 = vmatpush1.msra.mxu0 0.0
        %334 = vmatprep.subr.mxu0 0.0
        %335 = vmatpush1.msra.mxu0 0.0
        %336 = vmatprep.subr.mxu0 0.0
        %337 = vmatpush1.msra.mxu0 0.0
        %338 = vmatprep.subr.mxu0 0.0
        %339 = vmatpush1.msra.mxu0 0.0
        %340 = vmatprep.subr.mxu0 0.0
        %341 = vmatpush1.msra.mxu0 0.0
        %342 = vmatprep.subr.mxu0 0.0
        %343 = vmatpush1.msra.mxu0 0.0
        %344 = vmatprep.subr.mxu0 0.0
        %345 = vmatpush1.msra.mxu0 0.0
        %346 = vmatprep.subr.mxu0 0.0
        %347 = vmatpush1.msra.mxu0 0.0
        %348 = vmatprep.subr.mxu0 0.0
        %349 = vmatpush1.msra.mxu0 0.0
        %350 = vmatprep.subr.mxu0 0.0
        %351 = vmatpush1.msra.mxu0 0.0
        %352 = vmatprep.subr.mxu0 0.0
        %353 = vmatpush1.msra.mxu0 %v202
        %354 = vmatprep.subr.mxu0 0.0
        %355 = vmatpush1.msra.mxu0 %v201
        %356 = vmatprep.subr.mxu0 0.0
        %357 = vmatpush2.msra.mxu0 0.0
        %358 = vmatprep.subr.mxu0 0.0
        %359 = vmatpush2.msra.mxu0 0.0
        %360 = vmatprep.subr.mxu0 0.0
        %361 = vmatpush2.msra.mxu0 0.0
        %362 = vmatprep.subr.mxu0 0.0
        %363 = vmatpush2.msra.mxu0 0.0
        %364 = vmatprep.subr.mxu0 0.0
        %365 = vmatpush2.msra.mxu0 0.0
        %366 = vmatprep.subr.mxu0 0.0
        %367 = vmatpush2.msra.mxu0 0.0
        %368 = vmatprep.subr.mxu0 0.0
        %369 = vmatpush2.msra.mxu0 0.0
        %370 = vmatprep.subr.mxu0 0.0
        %371 = vmatpush2.msra.mxu0 0.0
        %372 = vmatprep.subr.mxu0 0.0
        %373 = vmatpush2.msra.mxu0 0.0
        %374 = vmatprep.subr.mxu0 0.0
        %375 = vmatpush2.msra.mxu0 0.0
        %376 = vmatprep.subr.mxu0 0.0
        %377 = vmatpush2.msra.mxu0 0.0
        %378 = vmatprep.subr.mxu0 0.0
        %379 = vmatpush2.msra.mxu0 0.0
        %380 = vmatprep.subr.mxu0 0.0
        %381 = vmatpush2.msra.mxu0 0.0
        %382 = vmatprep.subr.mxu0 0.0
        %383 = vmatpush2.msra.mxu0 0.0
        %384 = vmatprep.subr.mxu0 0.0
        %385 = vmatpush2.msra.mxu0 0.0
        %386 = vmatprep.subr.mxu0 0.0
        %387 = vmatpush2.msra.mxu0 0.0
        %388 = vmatprep.mubr.f32.mxu0 0.0
        %389 = vmatmul.mubr.f32.gmra.mxu0 %v313
        %v390 = vpop.f32.mrf.mxu0
        %v391 = vadd.f32 %v310, %v390
        %v392 = vpop.f32.mrf.mxu0
        %393 = vmatprep.mubr.f32.mxu0 0.0
        %394 = vmatmul.mubr.f32.gmra.mxu0 %v316
        %v395 = vpop.f32.mrf.mxu0
        %v396 = vadd.f32 %v310, %v395
        %v397 = vpop.f32.mrf.mxu0
        %398 = vmatprep.mubr.f32.mxu0 0.0
        %399 = vmatmul.mubr.f32.gmra.mxu0 %v319
        %v400 = vpop.f32.mrf.mxu0
        %v401 = vadd.f32 %v310, %v400
        %v402 = vpop.f32.mrf.mxu0
        %403 = vmatprep.mubr.f32.mxu0 0.0
        %404 = vmatmul.mubr.f32.gmra.mxu0 %v322
        %v405 = vpop.f32.mrf.mxu0
        %v406 = vadd.f32 %v310, %v405
        %v407 = vpop.f32.mrf.mxu0
        %408 = vdwg.mxu0
        %vm409 = vcmask 261120
        %410 = vst.msk [vmem:[%s191] sm:$0xff] %vm409, %v391
        %411 = vst.msk [vmem:[%s191 + $0x8] sm:$0xff] %vm409, %v396
        %412 = vst.msk [vmem:[%s191 + $0x10] sm:$0xff] %vm409, %v401
        %413 = vst.msk [vmem:[%s191 + $0x18] sm:$0xff] %vm409, %v406
        %s414 = sand.u32 %s116, 1
        %s415 = scalar_lea.sflag [#allocation4], %s414
        %s416 = sand.u32 %s116, 1
        %s417 = smul.addr %s416, 32
        %s418 = scalar_lea.vmem [#allocation3], %s417
        // Predicated region
        $region37: #{tpu_custom_call.1} parent=35 // pred_check
          %p419 = pneg %p126
        $region38: #{tpu_custom_call.1} parent=35 // pred_check_branch
          %421 = sbr.rel (%p419) target = $region40
        $region39: #{tpu_custom_call.1} parent=35 // pred_region
          %s423 = ssub.s32 512, 512
          %424 = vsyncadd %s415, %s423
          %s425 = smul.addr %s19, 4
          %s426 = smul.addr %s425, 128
          %s427 = scalar_lea.hbm %s4, %s426
          %s428 = sshll.u32 %s418, 4
          %s429 = int_to_ptr.vmem [resolvable:$true] %s428
          %434 = dma.vmem_to_hbm [thread:$0]  %s429, 512, %s427, %s415, 128, 128, 8
        $region40: #{tpu_custom_call.1} parent=35 // pred_fallthru
          _
      $region36: #{tpu_custom_call.1} parent=5 // pred_fallthru
        _
      %p435 = scmp.le.s32.totalorder 2, %s14
      // Predicated region
      $region41: #{tpu_custom_call.1} parent=5 // pred_check
        %p436 = pneg %p435
      $region42: #{tpu_custom_call.1} parent=5 // pred_check_branch
        %438 = sbr.rel (%p436) target = $region44
      $region43: #{tpu_custom_call.1} parent=5 // pred_region
        %s439 = ssub.s32 %s14, 2
        // Predicated region
        $region45: #{tpu_custom_call.1} parent=43 // pred_check
          %p440 = pneg %p132
        $region46: #{tpu_custom_call.1} parent=43 // pred_check_branch
          %442 = sbr.rel (%p440) target = $region48
        $region47: #{tpu_custom_call.1} parent=43 // pred_region
          %s443 = sand.u32 %s117, 1
          %s444 = scalar_lea.sflag [#allocation4], %s443
          %s445 = sand.u32 %s117, 1
          %s446 = smul.addr %s445, 32
          %s447 = scalar_lea.vmem [#allocation3], %s446
          %448 = dma.done %s444, 512
        $region48: #{tpu_custom_call.1} parent=43 // pred_fallthru
          _
      $region44: #{tpu_custom_call.1} parent=5 // pred_fallthru
        _
    $region6: #{tpu_custom_call.1} parent=1 // loop_footer
      %s18 = sadd.s32 1, %s14
    $region7: #{tpu_custom_call.1} parent=1 // loop_footer_branch
      %13 = sbr.rel target = $region3
    $region8: #{tpu_custom_call.1} parent=1 // loop_exit
      _
    %449 = vsyncpa [#allocation4], 1
    %s450 = scalar_lea.sflag [#allocation4], 1
    %451 = vsyncpa %s450, 1

</llo_original>
